<compile_context>
chip_gen: v7x
topology: tpu7x:2x2x1
jax: 0.10.0
libtpu: 0.0.40
codegen_flags: <defaults>
</compile_context>

<pallas_src>
import jax
import jax.numpy as jnp
from jax.experimental import pallas as pl
from jax.experimental.pallas import tpu as pltpu


def _round_up(x, m):
    return ((x + m - 1) // m) * m


# ------------------------------ Pallas kernel ------------------------------

def _fcblock_kernel(x_ref, w1_ref, b1_ref, w2_ref, b2_ref, w3_ref, b3_ref, o_ref):
    # x: [mt, K] f32          w1: [K, H1p]  bf16   b1: [1, H1p] f32
    # w2: [H1p, H2p] bf16     b2: [1, H2p]  f32
    # w3: [H2p, Op]  bf16     b3: [1, Op]   f32    o: [mt, Op]  f32
    bf16 = jnp.bfloat16

    h = jnp.dot(x_ref[...].astype(bf16), w1_ref[...],
                preferred_element_type=jnp.float32)
    h = jnp.maximum(h + b1_ref[...], 0.0)                      # fc1 + ReLU (f32)

    h = jnp.dot(h.astype(bf16), w2_ref[...],
                preferred_element_type=jnp.float32)
    h = jnp.maximum(h + b2_ref[...], 0.0)                      # fc2 + ReLU (f32)

    h = jnp.dot(h.astype(bf16), w3_ref[...],
                preferred_element_type=jnp.float32)
    o_ref[...] = (h + b3_ref[...]).astype(o_ref.dtype)         # fc3 (no act.)


# ------------------------------ core pallas_call ----------------------------

def _fcblock_pallas(x, w1, b1, w2, b2, w3, b3, *, block_m, interpret):
    B, K = x.shape
    H1p = w1.shape[1]
    H2p = w2.shape[1]
    Op = w3.shape[1]

    # Row tiling: masked last tile via cdiv grid (no activation padding).
    mt = min(block_m, _round_up(B, 8))
    if B >= 256 and pl.cdiv(B, mt) < 2:
        # v7x megacore: make sure there are >= 2 row tiles to shard.
        mt = max(128, _round_up(pl.cdiv(B, 2), 8))
    grid = (pl.cdiv(B, mt),)

    # Advisory cost estimate for XLA scheduling around the custom call.
    flops = 2 * B * (K * H1p + H1p * H2p + H2p * Op)
    bytes_accessed = (
        B * K * x.dtype.itemsize
        + (w1.size + w2.size + w3.size) * 2        # bf16 weights
        + (b1.size + b2.size + b3.size) * 4        # f32 biases
        + B * Op * 4)                              # f32 output

    # VMEM budget: resident weights (double-buffered by default) +
    # double-buffered activation/output tiles + largest live intermediate.
    vmem_needed = (
        2 * (w1.size + w2.size + w3.size) * 2
        + 2 * (b1.size + b2.size + b3.size) * 4
        + 2 * mt * K * 4
        + 2 * mt * Op * 4
        + 2 * mt * max(H1p, H2p) * 4)
    vmem_limit = int(min(64 * 1024 * 1024,
                         max(32 * 1024 * 1024, int(1.5 * vmem_needed))))

    return pl.pallas_call(
        _fcblock_kernel,
        out_shape=jax.ShapeDtypeStruct((B, Op), jnp.float32),
        grid=grid,
        in_specs=[
            pl.BlockSpec((mt, K), lambda i: (i, 0)),       # activations: tiled on M
            pl.BlockSpec((K, H1p), lambda i: (0, 0)),      # weights/biases: resident
            pl.BlockSpec((1, H1p), lambda i: (0, 0)),
            pl.BlockSpec((H1p, H2p), lambda i: (0, 0)),
            pl.BlockSpec((1, H2p), lambda i: (0, 0)),
            pl.BlockSpec((H2p, Op), lambda i: (0, 0)),
            pl.BlockSpec((1, Op), lambda i: (0, 0)),
        ],
        out_specs=pl.BlockSpec((mt, Op), lambda i: (i, 0)),
        compiler_params=pltpu.CompilerParams(
            dimension_semantics=("parallel",),             # row tiles shard on v7x
            vmem_limit_bytes=vmem_limit),
        cost_estimate=pl.CostEstimate(flops=flops, transcendentals=0,
                                      bytes_accessed=bytes_accessed),
        interpret=interpret,
    )(x, w1, b1, w2, b2, w3, b3)


# ------------------------------ param prep + jitted forward -----------------

def prepare_params(params):
    """One-time pad (feature dims -> multiples of 128) + bf16 cast of weights."""
    f32, bf16 = jnp.float32, jnp.bfloat16
    w1, b1 = params["fc1_w"], params["fc1_b"]
    w2, b2 = params["fc2_w"], params["fc2_b"]
    w3, b3 = params["fc3_w"], params["fc3_b"]

    K, H1 = w1.shape
    H2 = w2.shape[1]
    O = w3.shape[1]
    H1p, H2p, Op = _round_up(H1, 128), _round_up(H2, 128), _round_up(O, 128)

    def pad_w(w, rows, cols):
        return jnp.pad(w.astype(f32),
                       ((0, rows - w.shape[0]), (0, cols - w.shape[1]))).astype(bf16)

    def pad_b(b, cols):
        return jnp.pad(b.astype(f32), (0, cols - b.shape[0])).reshape(1, cols)

    return (pad_w(w1, K, H1p), pad_b(b1, H1p),
            pad_w(w2, H1p, H2p), pad_b(b2, H2p),
            pad_w(w3, H2p, Op), pad_b(b3, Op))


def make_fcblock_forward(params, *, block_m=256, interpret=False):
    """Returns a jitted forward(x) -> [B, output_dim]; padding done once here."""
    prep = prepare_params(params)
    out_dim = int(params["fc3_w"].shape[1])

    @jax.jit
    def forward(x):
        out_padded = _fcblock_pallas(x, *prep, block_m=block_m, interpret=interpret)
        return out_padded[:, :out_dim]

    return forward


# ------------------------------ params / reference ---------------------------

def init_params(key, input_dim, hidden_dims, output_dim=10):
    """PyTorch nn.Linear-style init: U(-1/sqrt(fan_in), 1/sqrt(fan_in)).
    Weights stored as [in, out] (transpose of PyTorch's [out, in])."""
    ks = jax.random.split(key, 6)

    def u(k, shape, fan_in):
        bound = 1.0 / jnp.sqrt(jnp.float32(fan_in))
        return jax.random.uniform(k, shape, jnp.float32, -bound, bound)

    return {
        "fc1_w": u(ks[0], (input_dim, hidden_dims[0]), input_dim),
        "fc1_b": u(ks[1], (hidden_dims[0],), input_dim),
        "fc2_w": u(ks[2], (hidden_dims[0], hidden_dims[1]), hidden_dims[0]),
        "fc2_b": u(ks[3], (hidden_dims[1],), hidden_dims[0]),
        "fc3_w": u(ks[4], (hidden_dims[1], output_dim), hidden_dims[1]),
        "fc3_b": u(ks[5], (output_dim,), hidden_dims[1]),
    }


def _reference_forward(x, params, match_kernel_precision=False):
    if match_kernel_precision:
        def dot(a, b):
            return jnp.dot(a.astype(jnp.bfloat16), b.astype(jnp.bfloat16),
                           preferred_element_type=jnp.float32)
    else:
        def dot(a, b):
            return jnp.dot(a, b, preferred_element_type=jnp.float32)

    h = jnp.maximum(dot(x, params["fc1_w"]) + params["fc1_b"], 0.0)
    h = jnp.maximum(dot(h, params["fc2_w"]) + params["fc2_b"], 0.0)
    return dot(h, params["fc3_w"]) + params["fc3_b"]


# ------------------------------ main ------------------------------------------

if __name__ == "__main__":
    key = jax.random.PRNGKey(0)
    k_x, k_p = jax.random.split(key)

    # Small shapes consistent with the module (LeNet-style FC head).
    B = 2
    input_dim = 400
    hidden_dims = (120, 84)
    output_dim = 10

    x = jax.random.normal(k_x, (B, input_dim), dtype=jnp.float32)
    params = init_params(k_p, input_dim, hidden_dims, output_dim)

    forward = make_fcblock_forward(params, block_m=256)
    out = jax.block_until_ready(forward(x))

    ref_bf16 = jax.block_until_ready(
        _reference_forward(x, params, match_kernel_precision=True))
    ref_f32 = jax.block_until_ready(
        _reference_forward(x, params, match_kernel_precision=False))

    assert out.shape == (B, output_dim), out.shape
    # Tight check vs. a reference with identical (bf16-operand, f32-acc) numerics.
    assert jnp.allclose(out, ref_bf16, atol=1e-3, rtol=1e-3), "mismatch vs bf16 reference"
    # Loose sanity check vs. the full-f32 reference (bf16 MXU rounding tolerance).
    assert jnp.allclose(out, ref_f32, atol=5e-2, rtol=5e-2), "mismatch vs f32 reference"

    print("KERNEL_OK")
</pallas_src>

<mosaic_0001>
module attributes {stable_mosaic.version = 11 : i64} {
  func.func @_fcblock_kernel(%arg0: i32, %arg1: memref<8x400xf32, #tpu.memory_space<vmem>>, %arg2: memref<400x128xbf16, #tpu.memory_space<vmem>>, %arg3: memref<1x128xf32, #tpu.memory_space<vmem>>, %arg4: memref<128x128xbf16, #tpu.memory_space<vmem>>, %arg5: memref<1x128xf32, #tpu.memory_space<vmem>>, %arg6: memref<128x128xbf16, #tpu.memory_space<vmem>>, %arg7: memref<1x128xf32, #tpu.memory_space<vmem>>, %arg8: memref<8x128xf32, #tpu.memory_space<vmem>>) attributes {dimension_semantics = [#tpu.dimension_semantics<parallel>], iteration_bounds = array<i64: 1>, scalar_prefetch = 0 : i64, scratch_operands = 0 : i64, tpu.core_type = #tpu.core_type<tc>, window_params = [{transform_indices = @transform_0, window_bounds = array<i64: 8, 400>}, {pipeline_mode = #tpu.pipeline_mode<synchronous>, transform_indices = @transform_1, window_bounds = array<i64: 400, 128>}, {pipeline_mode = #tpu.pipeline_mode<synchronous>, transform_indices = @transform_2, window_bounds = array<i64: 1, 128>}, {pipeline_mode = #tpu.pipeline_mode<synchronous>, transform_indices = @transform_3, window_bounds = array<i64: 128, 128>}, {pipeline_mode = #tpu.pipeline_mode<synchronous>, transform_indices = @transform_4, window_bounds = array<i64: 1, 128>}, {pipeline_mode = #tpu.pipeline_mode<synchronous>, transform_indices = @transform_5, window_bounds = array<i64: 128, 128>}, {pipeline_mode = #tpu.pipeline_mode<synchronous>, transform_indices = @transform_6, window_bounds = array<i64: 1, 128>}, {transform_indices = @transform_7, window_bounds = array<i64: 8, 128>}]} {
    %c0 = arith.constant 0 : index
    %c0_0 = arith.constant 0 : index
    %0 = vector.load %arg1[%c0, %c0_0] : memref<8x400xf32, #tpu.memory_space<vmem>>, vector<8x400xf32>
    %1 = arith.truncf %0 : vector<8x400xf32> to vector<8x400xbf16>
    %c0_1 = arith.constant 0 : index
    %c0_2 = arith.constant 0 : index
    %2 = vector.load %arg2[%c0_1, %c0_2] : memref<400x128xbf16, #tpu.memory_space<vmem>>, vector<400x128xbf16>
    %cst = arith.constant dense<0.000000e+00> : vector<8x128xf32>
    %3 = tpu.matmul %1, %2, %cst {dimension_numbers = #tpu.dot_dimension_numbers<[1], [0], [0], [1], [0, 0, 1, 1], [], []>} : vector<8x400xbf16>, vector<400x128xbf16>, vector<8x128xf32> -> vector<8x128xf32>
    %c0_3 = arith.constant 0 : index
    %c0_4 = arith.constant 0 : index
    %4 = vector.load %arg3[%c0_3, %c0_4] : memref<1x128xf32, #tpu.memory_space<vmem>>, vector<1x128xf32>
    %5 = vector.broadcast %4 : vector<1x128xf32> to vector<8x128xf32>
    %6 = arith.addf %3, %5 : vector<8x128xf32>
    %cst_5 = arith.constant 0.000000e+00 : f32
    %7 = vector.broadcast %cst_5 : f32 to vector<8x128xf32>
    %8 = arith.maximumf %6, %7 : vector<8x128xf32>
    %9 = arith.truncf %8 : vector<8x128xf32> to vector<8x128xbf16>
    %c0_6 = arith.constant 0 : index
    %c0_7 = arith.constant 0 : index
    %10 = vector.load %arg4[%c0_6, %c0_7] : memref<128x128xbf16, #tpu.memory_space<vmem>>, vector<128x128xbf16>
    %cst_8 = arith.constant dense<0.000000e+00> : vector<8x128xf32>
    %11 = tpu.matmul %9, %10, %cst_8 {dimension_numbers = #tpu.dot_dimension_numbers<[1], [0], [0], [1], [0, 0, 1, 1], [], []>} : vector<8x128xbf16>, vector<128x128xbf16>, vector<8x128xf32> -> vector<8x128xf32>
    %c0_9 = arith.constant 0 : index
    %c0_10 = arith.constant 0 : index
    %12 = vector.load %arg5[%c0_9, %c0_10] : memref<1x128xf32, #tpu.memory_space<vmem>>, vector<1x128xf32>
    %13 = vector.broadcast %12 : vector<1x128xf32> to vector<8x128xf32>
    %14 = arith.addf %11, %13 : vector<8x128xf32>
    %cst_11 = arith.constant 0.000000e+00 : f32
    %15 = vector.broadcast %cst_11 : f32 to vector<8x128xf32>
    %16 = arith.maximumf %14, %15 : vector<8x128xf32>
    %17 = arith.truncf %16 : vector<8x128xf32> to vector<8x128xbf16>
    %c0_12 = arith.constant 0 : index
    %c0_13 = arith.constant 0 : index
    %18 = vector.load %arg6[%c0_12, %c0_13] : memref<128x128xbf16, #tpu.memory_space<vmem>>, vector<128x128xbf16>
    %cst_14 = arith.constant dense<0.000000e+00> : vector<8x128xf32>
    %19 = tpu.matmul %17, %18, %cst_14 {dimension_numbers = #tpu.dot_dimension_numbers<[1], [0], [0], [1], [0, 0, 1, 1], [], []>} : vector<8x128xbf16>, vector<128x128xbf16>, vector<8x128xf32> -> vector<8x128xf32>
    %c0_15 = arith.constant 0 : index
    %c0_16 = arith.constant 0 : index
    %20 = vector.load %arg7[%c0_15, %c0_16] : memref<1x128xf32, #tpu.memory_space<vmem>>, vector<1x128xf32>
    %21 = vector.broadcast %20 : vector<1x128xf32> to vector<8x128xf32>
    %22 = arith.addf %19, %21 : vector<8x128xf32>
    %c0_17 = arith.constant 0 : index
    %c0_18 = arith.constant 0 : index
    %23 = vector.load %arg8[%c0_17, %c0_18] : memref<8x128xf32, #tpu.memory_space<vmem>>, vector<8x128xf32>
    tpu.vector_store %arg8[%c0_17, %c0_18], %22 {strides = array<i32>} : memref<8x128xf32, #tpu.memory_space<vmem>>, vector<8x128xf32>,
    return
  }
  func.func @transform_0(%arg0: i32) -> (i32, i32) {
    %c0_i32 = arith.constant 0 : i32
    %c0_i32_0 = arith.constant 0 : i32
    return %arg0, %c0_i32 : i32, i32
  }
  func.func @transform_1(%arg0: i32) -> (i32, i32) {
    %c0_i32 = arith.constant 0 : i32
    %c0_i32_0 = arith.constant 0 : i32
    %c0_i32_1 = arith.constant 0 : i32
    return %c0_i32, %c0_i32_0 : i32, i32
  }
  func.func @transform_2(%arg0: i32) -> (i32, i32) {
    %c0_i32 = arith.constant 0 : i32
    %c0_i32_0 = arith.constant 0 : i32
    %c0_i32_1 = arith.constant 0 : i32
    return %c0_i32, %c0_i32_0 : i32, i32
  }
  func.func @transform_3(%arg0: i32) -> (i32, i32) {
    %c0_i32 = arith.constant 0 : i32
    %c0_i32_0 = arith.constant 0 : i32
    %c0_i32_1 = arith.constant 0 : i32
    return %c0_i32, %c0_i32_0 : i32, i32
  }
  func.func @transform_4(%arg0: i32) -> (i32, i32) {
    %c0_i32 = arith.constant 0 : i32
    %c0_i32_0 = arith.constant 0 : i32
    %c0_i32_1 = arith.constant 0 : i32
    return %c0_i32, %c0_i32_0 : i32, i32
  }
  func.func @transform_5(%arg0: i32) -> (i32, i32) {
    %c0_i32 = arith.constant 0 : i32
    %c0_i32_0 = arith.constant 0 : i32
    %c0_i32_1 = arith.constant 0 : i32
    return %c0_i32, %c0_i32_0 : i32, i32
  }
  func.func @transform_6(%arg0: i32) -> (i32, i32) {
    %c0_i32 = arith.constant 0 : i32
    %c0_i32_0 = arith.constant 0 : i32
    %c0_i32_1 = arith.constant 0 : i32
    return %c0_i32, %c0_i32_0 : i32, i32
  }
  func.func @transform_7(%arg0: i32) -> (i32, i32) {
    %c0_i32 = arith.constant 0 : i32
    %c0_i32_0 = arith.constant 0 : i32
    return %arg0, %c0_i32 : i32, i32
  }
}

</mosaic_0001>

<llo_original>
// kernel: forward.1
$region0: #{forward.1}
  #allocation0 [shape = 'u32[]', space=smem, size = 0x4, offset = 0x4, fixed_abs, tag = 'smem constant byte address 0x4 - core index']
  #allocation1 [shape = 'u32[144,128]{1,0:T(1,128)}', space=vmem, size = 0x12000, scoped, tag = 'internal scratch']
  %s0 = inlined_call_operand.vmem [shape: f32[2,400], index: 0, kind: input, shape index: {}]
  %s1 = inlined_call_operand.hbm [shape: bf16[400,128], index: 1, kind: input, shape index: {}]
  %s2 = inlined_call_operand.vmem [shape: f32[1,128], index: 2, kind: input, shape index: {}]
  %s3 = inlined_call_operand.hbm [shape: bf16[128,128], index: 3, kind: input, shape index: {}]
  %s4 = inlined_call_operand.vmem [shape: f32[1,128], index: 4, kind: input, shape index: {}]
  %s5 = inlined_call_operand.hbm [shape: bf16[128,128], index: 5, kind: input, shape index: {}]
  %s6 = inlined_call_operand.vmem [shape: f32[1,128], index: 6, kind: input, shape index: {}]
  %s7 = inlined_call_operand.hbm [shape: f32[2,128], index: 7, kind: output, shape index: {}]
  %s8 = sld [smem:[#allocation0]]
  $region50: #{forward.1} parent=0
    _
  %s10 = ssub.s32 1, %s8
  %s11 = scalar_select 0, %s10, %s8
  $region1: #{forward.1} parent=0
    #allocation2 [shape = 'u8[102400]{0}', space=vmem, size = 0x19000, scoped, tag = 'input window, operand 1, single buffered']
    #allocation3 [shape = 's32[1]{0}', space=sflag, size = 0x4, scoped, tag = 'scoped memory for forward.1']
    #allocation4 [shape = 's32[1]{0}', space=sflag, size = 0x4, scoped, tag = 'scoped memory for forward.1']
    #allocation5 [shape = 'u8[32768]{0}', space=vmem, size = 0x8000, scoped, tag = 'input window, operand 3, single buffered']
    #allocation6 [shape = 's32[1]{0}', space=sflag, size = 0x4, scoped, tag = 'scoped memory for forward.1']
    #allocation7 [shape = 'u8[32768]{0}', space=vmem, size = 0x8000, scoped, tag = 'input window, operand 5, single buffered']
    #allocation8 [shape = 'u8[4096]{0}', space=vmem, size = 0x1000, scoped, tag = 'output window, operand 0, single buffered']
    %12 = vsyncpa [#allocation3], 0
    %13 = vsyncpa [#allocation6], 0
    %14 = vsyncpa [#allocation4], 0
    // Predicated region
    $region2: #{forward.1} parent=1 // pred_check
      _
    $region3: #{forward.1} parent=1 // pred_check_branch
      %16 = sbr.rel (0) target = $region5
    $region4: #{forward.1} parent=1 // pred_region
      _
    $region5: #{forward.1} parent=1 // pred_fallthru
      _
    // Predicated region
    $region6: #{forward.1} parent=1 // pred_check
      _
    $region7: #{forward.1} parent=1 // pred_check_branch
      %18 = sbr.rel (0) target = $region9
    $region8: #{forward.1} parent=1 // pred_region
      %s20 = ssub.s32 3200, 3200
      %21 = vsyncadd [#allocation3], %s20
      %s22 = sshll.u32 [#allocation2], 4
      %s23 = int_to_ptr.vmem [resolvable:$true] %s22
      %28 = dma.hbm_to_vmem [thread:$0]  %s1, 3200, %s23, [#allocation3], 64, 64, 4
    $region9: #{forward.1} parent=1 // pred_fallthru
      _
    // Predicated region
    $region10: #{forward.1} parent=1 // pred_check
      _
    $region11: #{forward.1} parent=1 // pred_check_branch
      %30 = sbr.rel (0) target = $region13
    $region12: #{forward.1} parent=1 // pred_region
      _
    $region13: #{forward.1} parent=1 // pred_fallthru
      _
    // Predicated region
    $region14: #{forward.1} parent=1 // pred_check
      _
    $region15: #{forward.1} parent=1 // pred_check_branch
      %32 = sbr.rel (0) target = $region17
    $region16: #{forward.1} parent=1 // pred_region
      %s34 = ssub.s32 1024, 1024
      %35 = vsyncadd [#allocation6], %s34
      %s36 = sshll.u32 [#allocation5], 4
      %s37 = int_to_ptr.vmem [resolvable:$true] %s36
      %42 = dma.hbm_to_vmem [thread:$0]  %s3, 1024, %s37, [#allocation6], 64, 64, 4
    $region17: #{forward.1} parent=1 // pred_fallthru
      _
    // Predicated region
    $region18: #{forward.1} parent=1 // pred_check
      _
    $region19: #{forward.1} parent=1 // pred_check_branch
      %44 = sbr.rel (0) target = $region21
    $region20: #{forward.1} parent=1 // pred_region
      _
    $region21: #{forward.1} parent=1 // pred_fallthru
      _
    // Predicated region
    $region22: #{forward.1} parent=1 // pred_check
      _
    $region23: #{forward.1} parent=1 // pred_check_branch
      %46 = sbr.rel (0) target = $region25
    $region24: #{forward.1} parent=1 // pred_region
      %s48 = ssub.s32 1024, 1024
      %49 = vsyncadd [#allocation6], %s48
      %s50 = sshll.u32 [#allocation7], 4
      %s51 = int_to_ptr.vmem [resolvable:$true] %s50
      %56 = dma.hbm_to_vmem [thread:$0]  %s5, 1024, %s51, [#allocation6], 64, 64, 4
    $region25: #{forward.1} parent=1 // pred_fallthru
      _
    // Predicated region
    $region26: #{forward.1} parent=1 // pred_check
      _
    $region27: #{forward.1} parent=1 // pred_check_branch
      %58 = sbr.rel (0) target = $region29
    $region28: #{forward.1} parent=1 // pred_region
      _
    $region29: #{forward.1} parent=1 // pred_fallthru
      _
    // Predicated region
    $region30: #{forward.1} parent=1 // pred_check
      _
    $region31: #{forward.1} parent=1 // pred_check_branch
      %60 = sbr.rel (0) target = $region33
    $region32: #{forward.1} parent=1 // pred_region
      %61 = dma.done [#allocation3], 3200
    $region33: #{forward.1} parent=1 // pred_fallthru
      _
    // Predicated region
    $region34: #{forward.1} parent=1 // pred_check
      _
    $region35: #{forward.1} parent=1 // pred_check_branch
      %63 = sbr.rel (0) target = $region37
    $region36: #{forward.1} parent=1 // pred_region
      %64 = dma.done [#allocation6], 1024
    $region37: #{forward.1} parent=1 // pred_fallthru
      _
    // Predicated region
    $region38: #{forward.1} parent=1 // pred_check
      _
    $region39: #{forward.1} parent=1 // pred_check_branch
      %66 = sbr.rel (0) target = $region41
    $region40: #{forward.1} parent=1 // pred_region
      %67 = dma.done [#allocation6], 1024
    $region41: #{forward.1} parent=1 // pred_fallthru
      _
    %v69 = vld [vmem:[%s0] sm:$0xff]
    %v70 = vld [vmem:[%s0 + $0x8] sm:$0xff]
    %v71 = vld [vmem:[%s0 + $0x10] sm:$0xff]
    %v72 = vld [vmem:[%s0 + $0x18] sm:$0xff]
    %v77 = vcombine.low %v69, %v70
    %v78 = vcombine.high %v69, %v70
    %v79 = vcombine.low %v71, %v72
    %v80 = vcombine.high %v71, %v72
    %v82 = vunpack.c.l.s4 1983009808
    %v83 = vunpack.c.0.s8 %v82
    %v84 = vlaneseq
    %v85 = vshrl.u32 %v84, 7
    %v86 = vsub.s32 %v83, %v85
    %v87 = vrot.slane %v77, %v86
    %v89 = vunpack.c.l.s4 1983009808
    %v90 = vunpack.c.0.s8 %v89
    %v91 = vlaneseq
    %v92 = vshrl.u32 %v91, 7
    %v93 = vsub.s32 %v90, %v92
    %v94 = vrot.slane %v78, %v93
    %v96 = vunpack.c.l.s4 1983009808
    %v97 = vunpack.c.0.s8 %v96
    %v98 = vlaneseq
    %v99 = vshrl.u32 %v98, 7
    %v100 = vsub.s32 %v97, %v99
    %v101 = vrot.slane %v79, %v100
    %v103 = vunpack.c.l.s4 1983009808
    %v104 = vunpack.c.0.s8 %v103
    %v105 = vlaneseq
    %v106 = vshrl.u32 %v105, 7
    %v107 = vsub.s32 %v104, %v106
    %v108 = vrot.slane %v80, %v107
    %v109 = vcombine.low %v87, %v101
    %v110 = vcombine.high %v87, %v101
    %v111 = vcombine.low %v94, %v108
    %v112 = vcombine.high %v94, %v108
    %v117 = vpack.c.bf16 %v109, %v109
    %v118 = vpack.c.bf16 %v110, %v110
    %v119 = vpack.c.bf16 %v111, %v111
    %v120 = vpack.c.bf16 %v112, %v112
    %v121 = vld [vmem:[#allocation2] sm:$0xf]
    %v122 = vld [vmem:[#allocation2 + $0x4] sm:$0xf]
    %v123 = vld [vmem:[#allocation2 + $0x8] sm:$0xf]
    %v124 = vld [vmem:[#allocation2 + $0xc] sm:$0xf]
    %v125 = vld [vmem:[#allocation2 + $0x10] sm:$0xf]
    %v126 = vld [vmem:[#allocation2 + $0x14] sm:$0xf]
    %v127 = vld [vmem:[#allocation2 + $0x18] sm:$0xf]
    %v128 = vld [vmem:[#allocation2 + $0x1c] sm:$0xf]
    %v129 = vld [vmem:[#allocation2 + $0x20] sm:$0xf]
    %v130 = vld [vmem:[#allocation2 + $0x24] sm:$0xf]
    %v131 = vld [vmem:[#allocation2 + $0x28] sm:$0xf]
    %v132 = vld [vmem:[#allocation2 + $0x2c] sm:$0xf]
    %v133 = vld [vmem:[#allocation2 + $0x30] sm:$0xf]
    %v134 = vld [vmem:[#allocation2 + $0x34] sm:$0xf]
    %v135 = vld [vmem:[#allocation2 + $0x38] sm:$0xf]
    %v136 = vld [vmem:[#allocation2 + $0x3c] sm:$0xf]
    %v137 = vld [vmem:[#allocation2 + $0x40] sm:$0xf]
    %v138 = vld [vmem:[#allocation2 + $0x44] sm:$0xf]
    %v139 = vld [vmem:[#allocation2 + $0x48] sm:$0xf]
    %v140 = vld [vmem:[#allocation2 + $0x4c] sm:$0xf]
    %v141 = vld [vmem:[#allocation2 + $0x50] sm:$0xf]
    %v142 = vld [vmem:[#allocation2 + $0x54] sm:$0xf]
    %v143 = vld [vmem:[#allocation2 + $0x58] sm:$0xf]
    %v144 = vld [vmem:[#allocation2 + $0x5c] sm:$0xf]
    %v145 = vld [vmem:[#allocation2 + $0x60] sm:$0xf]
    %v146 = vld [vmem:[#allocation2 + $0x64] sm:$0xf]
    %v147 = vld [vmem:[#allocation2 + $0x68] sm:$0xf]
    %v148 = vld [vmem:[#allocation2 + $0x6c] sm:$0xf]
    %v149 = vld [vmem:[#allocation2 + $0x70] sm:$0xf]
    %v150 = vld [vmem:[#allocation2 + $0x74] sm:$0xf]
    %v151 = vld [vmem:[#allocation2 + $0x78] sm:$0xf]
    %v152 = vld [vmem:[#allocation2 + $0x7c] sm:$0xf]
    %v153 = vld [vmem:[#allocation2 + $0x80] sm:$0xf]
    %v154 = vld [vmem:[#allocation2 + $0x84] sm:$0xf]
    %v155 = vld [vmem:[#allocation2 + $0x88] sm:$0xf]
    %v156 = vld [vmem:[#allocation2 + $0x8c] sm:$0xf]
    %v157 = vld [vmem:[#allocation2 + $0x90] sm:$0xf]
    %v158 = vld [vmem:[#allocation2 + $0x94] sm:$0xf]
    %v159 = vld [vmem:[#allocation2 + $0x98] sm:$0xf]
    %v160 = vld [vmem:[#allocation2 + $0x9c] sm:$0xf]
    %v161 = vld [vmem:[#allocation2 + $0xa0] sm:$0xf]
    %v162 = vld [vmem:[#allocation2 + $0xa4] sm:$0xf]
    %v163 = vld [vmem:[#allocation2 + $0xa8] sm:$0xf]
    %v164 = vld [vmem:[#allocation2 + $0xac] sm:$0xf]
    %v165 = vld [vmem:[#allocation2 + $0xb0] sm:$0xf]
    %v166 = vld [vmem:[#allocation2 + $0xb4] sm:$0xf]
    %v167 = vld [vmem:[#allocation2 + $0xb8] sm:$0xf]
    %v168 = vld [vmem:[#allocation2 + $0xbc] sm:$0xf]
    %v169 = vld [vmem:[#allocation2 + $0xc0] sm:$0xf]
    %v170 = vld [vmem:[#allocation2 + $0xc4] sm:$0xf]
    %v171 = vld [vmem:[%s2] sm:$0x1]
    %v173 = vlaneseq
    %v174 = vshrl.u32 %v173, 7
    %v175 = vsub.s32 0, %v174
    %v176 = vrot.slane %v171, %v175
    %v228 = vunpack.c.l.b16 %v121
    %v229 = vunpack.c.l.b16 %v122
    %v230 = vunpack.c.l.b16 %v123
    %v231 = vunpack.c.l.b16 %v124
    %v232 = vunpack.c.l.b16 %v125
    %v233 = vunpack.c.l.b16 %v126
    %v234 = vunpack.c.l.b16 %v127
    %v235 = vunpack.c.l.b16 %v128
    %v236 = vunpack.c.l.b16 %v129
    %v237 = vunpack.c.l.b16 %v130
    %v238 = vunpack.c.l.b16 %v131
    %v239 = vunpack.c.l.b16 %v132
    %v240 = vunpack.c.l.b16 %v133
    %v241 = vunpack.c.l.b16 %v134
    %v242 = vunpack.c.l.b16 %v135
    %v243 = vunpack.c.l.b16 %v136
    %v244 = vunpack.c.l.b16 %v137
    %v245 = vunpack.c.l.b16 %v138
    %v246 = vunpack.c.l.b16 %v139
    %v247 = vunpack.c.l.b16 %v140
    %v248 = vunpack.c.l.b16 %v141
    %v249 = vunpack.c.l.b16 %v142
    %v250 = vunpack.c.l.b16 %v143
    %v251 = vunpack.c.l.b16 %v144
    %v252 = vunpack.c.l.b16 %v145
    %v253 = vunpack.c.l.b16 %v146
    %v254 = vunpack.c.l.b16 %v147
    %v255 = vunpack.c.l.b16 %v148
    %v256 = vunpack.c.l.b16 %v149
    %v257 = vunpack.c.l.b16 %v150
    %v258 = vunpack.c.l.b16 %v151
    %v259 = vunpack.c.l.b16 %v152
    %v260 = vunpack.c.l.b16 %v153
    %v261 = vunpack.c.l.b16 %v154
    %v262 = vunpack.c.l.b16 %v155
    %v263 = vunpack.c.l.b16 %v156
    %v264 = vunpack.c.l.b16 %v157
    %v265 = vunpack.c.l.b16 %v158
    %v266 = vunpack.c.l.b16 %v159
    %v267 = vunpack.c.l.b16 %v160
    %v268 = vunpack.c.l.b16 %v161
    %v269 = vunpack.c.l.b16 %v162
    %v270 = vunpack.c.l.b16 %v163
    %v271 = vunpack.c.l.b16 %v164
    %v272 = vunpack.c.l.b16 %v165
    %v273 = vunpack.c.l.b16 %v166
    %v274 = vunpack.c.l.b16 %v167
    %v275 = vunpack.c.l.b16 %v168
    %v276 = vunpack.c.l.b16 %v169
    %v277 = vunpack.c.l.b16 %v170
    %v278 = vpack.c.b16 %v229, %v228
    %v279 = vpack.c.b16 %v231, %v230
    %v280 = vpack.c.b16 %v233, %v232
    %v281 = vpack.c.b16 %v235, %v234
    %v282 = vpack.c.b16 %v237, %v236
    %v283 = vpack.c.b16 %v239, %v238
    %v284 = vpack.c.b16 %v241, %v240
    %v285 = vpack.c.b16 %v243, %v242
    %v286 = vpack.c.b16 %v245, %v244
    %v287 = vpack.c.b16 %v247, %v246
    %v288 = vpack.c.b16 %v249, %v248
    %v289 = vpack.c.b16 %v251, %v250
    %v290 = vpack.c.b16 %v253, %v252
    %v291 = vpack.c.b16 %v255, %v254
    %v292 = vpack.c.b16 %v257, %v256
    %v293 = vpack.c.b16 %v259, %v258
    %v294 = vpack.c.b16 %v261, %v260
    %v295 = vpack.c.b16 %v263, %v262
    %v296 = vpack.c.b16 %v265, %v264
    %v297 = vpack.c.b16 %v267, %v266
    %v298 = vpack.c.b16 %v269, %v268
    %v299 = vpack.c.b16 %v271, %v270
    %v300 = vpack.c.b16 %v273, %v272
    %v301 = vpack.c.b16 %v275, %v274
    %v302 = vpack.c.b16 %v277, %v276
    %vm328 = vcmask 130048
    %v330 = vsel %vm328, %v120, 0
    %332 = vmatprep.subr.bf16.mxu0 0
    %333 = vmatpush1.bf16.msra.mxu0 %v278
    %334 = vmatprep.subr.bf16.mxu0 0
    %335 = vmatpush1.bf16.msra.mxu0 %v279
    %336 = vmatprep.subr.bf16.mxu0 0
    %337 = vmatpush1.bf16.msra.mxu0 %v280
    %338 = vmatprep.subr.bf16.mxu0 0
    %339 = vmatpush1.bf16.msra.mxu0 %v281
    %340 = vmatprep.subr.bf16.mxu0 0
    %341 = vmatpush1.bf16.msra.mxu0 %v282
    %342 = vmatprep.subr.bf16.mxu0 0
    %343 = vmatpush1.bf16.msra.mxu0 %v283
    %344 = vmatprep.subr.bf16.mxu0 0
    %345 = vmatpush1.bf16.msra.mxu0 %v284
    %346 = vmatprep.subr.bf16.mxu0 0
    %347 = vmatpush1.bf16.msra.mxu0 %v285
    %348 = vmatprep.subr.bf16.mxu0 0
    %349 = vmatpush1.bf16.msra.mxu0 %v286
    %350 = vmatprep.subr.bf16.mxu0 0
    %351 = vmatpush1.bf16.msra.mxu0 %v287
    %352 = vmatprep.subr.bf16.mxu0 0
    %353 = vmatpush1.bf16.msra.mxu0 %v288
    %354 = vmatprep.subr.bf16.mxu0 0
    %355 = vmatpush1.bf16.msra.mxu0 %v289
    %356 = vmatprep.subr.bf16.mxu0 0
    %357 = vmatpush1.bf16.msra.mxu0 %v290
    %358 = vmatprep.subr.bf16.mxu0 0
    %359 = vmatpush1.bf16.msra.mxu0 %v291
    %360 = vmatprep.subr.bf16.mxu0 0
    %361 = vmatpush1.bf16.msra.mxu0 %v292
    %362 = vmatprep.subr.bf16.mxu0 0
    %363 = vmatpush1.bf16.msra.mxu0 %v293
    %364 = vmatprep.mubr.bf16.mxu0 %v118
    %365 = vmatmul.mubr.bf16.gmra.mrb[0].mxu0 %v117
    %v366 = vpop.f32.mrb[0].mxu0
    %v367 = vadd.f32 %v176, %v366
    %v368 = vpop.f32.mrb[0].mxu0
    %v369 = vpop.f32.mrb[0].mxu0
    %v370 = vpop.f32.mrb[0].mxu0
    %371 = vdwg.mxu0
    %372 = vmatprep.subr.bf16.mxu0 0
    %373 = vmatpush1.bf16.msra.mxu0 %v294
    %374 = vmatprep.subr.bf16.mxu0 0
    %375 = vmatpush1.bf16.msra.mxu0 %v295
    %376 = vmatprep.subr.bf16.mxu0 0
    %377 = vmatpush1.bf16.msra.mxu0 %v296
    %378 = vmatprep.subr.bf16.mxu0 0
    %379 = vmatpush1.bf16.msra.mxu0 %v297
    %380 = vmatprep.subr.bf16.mxu0 0
    %381 = vmatpush1.bf16.msra.mxu0 %v298
    %382 = vmatprep.subr.bf16.mxu0 0
    %383 = vmatpush1.bf16.msra.mxu0 %v299
    %384 = vmatprep.subr.bf16.mxu0 0
    %385 = vmatpush1.bf16.msra.mxu0 %v300
    %386 = vmatprep.subr.bf16.mxu0 0
    %387 = vmatpush1.bf16.msra.mxu0 %v301
    %388 = vmatprep.subr.bf16.mxu0 0
    %389 = vmatpush1.bf16.msra.mxu0 %v302
    %390 = vmatprep.subr.bf16.mxu0 0
    %391 = vmatpush1.bf16.msra.mxu0 0
    %392 = vmatprep.subr.bf16.mxu0 0
    %393 = vmatpush1.bf16.msra.mxu0 0
    %394 = vmatprep.subr.bf16.mxu0 0
    %395 = vmatpush1.bf16.msra.mxu0 0
    %396 = vmatprep.subr.bf16.mxu0 0
    %397 = vmatpush1.bf16.msra.mxu0 0
    %398 = vmatprep.subr.bf16.mxu0 0
    %399 = vmatpush1.bf16.msra.mxu0 0
    %400 = vmatprep.subr.bf16.mxu0 0
    %401 = vmatpush1.bf16.msra.mxu0 0
    %402 = vmatprep.subr.bf16.mxu0 0
    %403 = vmatpush1.bf16.msra.mxu0 0
    %404 = vmatprep.mubr.bf16.mxu0 %v330
    %405 = vmatmul.mubr.bf16.gmra.mrb[0].mxu0 %v119
    %v406 = vpop.f32.mrb[0].mxu0
    %v407 = vadd.f32 %v367, %v406
    %v408 = vpop.f32.mrb[0].mxu0
    %v409 = vpop.f32.mrb[0].mxu0
    %v410 = vpop.f32.mrb[0].mxu0
    %411 = vdwg.mxu0
    %v412 = vmax.f32 %v407, 0.0
    %v413 = vpack.c.bf16 %v412, %v412
    %v414 = vld [vmem:[#allocation5] sm:$0xf]
    %v415 = vld [vmem:[#allocation5 + $0x4] sm:$0xf]
    %v416 = vld [vmem:[#allocation5 + $0x8] sm:$0xf]
    %v417 = vld [vmem:[#allocation5 + $0xc] sm:$0xf]
    %v418 = vld [vmem:[#allocation5 + $0x10] sm:$0xf]
    %v419 = vld [vmem:[#allocation5 + $0x14] sm:$0xf]
    %v420 = vld [vmem:[#allocation5 + $0x18] sm:$0xf]
    %v421 = vld [vmem:[#allocation5 + $0x1c] sm:$0xf]
    %v422 = vld [vmem:[#allocation5 + $0x20] sm:$0xf]
    %v423 = vld [vmem:[#allocation5 + $0x24] sm:$0xf]
    %v424 = vld [vmem:[#allocation5 + $0x28] sm:$0xf]
    %v425 = vld [vmem:[#allocation5 + $0x2c] sm:$0xf]
    %v426 = vld [vmem:[#allocation5 + $0x30] sm:$0xf]
    %v427 = vld [vmem:[#allocation5 + $0x34] sm:$0xf]
    %v428 = vld [vmem:[#allocation5 + $0x38] sm:$0xf]
    %v429 = vld [vmem:[#allocation5 + $0x3c] sm:$0xf]
    %v430 = vld [vmem:[%s4] sm:$0x1]
    %v432 = vlaneseq
    %v433 = vshrl.u32 %v432, 7
    %v434 = vsub.s32 0, %v433
    %v435 = vrot.slane %v430, %v434
    %v453 = vunpack.c.l.b16 %v414
    %v454 = vunpack.c.l.b16 %v415
    %v455 = vunpack.c.l.b16 %v416
    %v456 = vunpack.c.l.b16 %v417
    %v457 = vunpack.c.l.b16 %v418
    %v458 = vunpack.c.l.b16 %v419
    %v459 = vunpack.c.l.b16 %v420
    %v460 = vunpack.c.l.b16 %v421
    %v461 = vunpack.c.l.b16 %v422
    %v462 = vunpack.c.l.b16 %v423
    %v463 = vunpack.c.l.b16 %v424
    %v464 = vunpack.c.l.b16 %v425
    %v465 = vunpack.c.l.b16 %v426
    %v466 = vunpack.c.l.b16 %v427
    %v467 = vunpack.c.l.b16 %v428
    %v468 = vunpack.c.l.b16 %v429
    %v469 = vpack.c.b16 %v454, %v453
    %v470 = vpack.c.b16 %v456, %v455
    %v471 = vpack.c.b16 %v458, %v457
    %v472 = vpack.c.b16 %v460, %v459
    %v473 = vpack.c.b16 %v462, %v461
    %v474 = vpack.c.b16 %v464, %v463
    %v475 = vpack.c.b16 %v466, %v465
    %v476 = vpack.c.b16 %v468, %v467
    %485 = vmatprep.subr.bf16.mxu0 0
    %486 = vmatpush1.bf16.msra.mxu0 %v469
    %487 = vmatprep.subr.bf16.mxu0 0
    %488 = vmatpush1.bf16.msra.mxu0 %v470
    %489 = vmatprep.subr.bf16.mxu0 0
    %490 = vmatpush1.bf16.msra.mxu0 %v471
    %491 = vmatprep.subr.bf16.mxu0 0
    %492 = vmatpush1.bf16.msra.mxu0 %v472
    %493 = vmatprep.subr.bf16.mxu0 0
    %494 = vmatpush1.bf16.msra.mxu0 %v473
    %495 = vmatprep.subr.bf16.mxu0 0
    %496 = vmatpush1.bf16.msra.mxu0 %v474
    %497 = vmatprep.subr.bf16.mxu0 0
    %498 = vmatpush1.bf16.msra.mxu0 %v475
    %499 = vmatprep.subr.bf16.mxu0 0
    %500 = vmatpush1.bf16.msra.mxu0 %v476
    %501 = vmatprep.subr.bf16.mxu0 0
    %502 = vmatpush1.bf16.msra.mxu0 0
    %503 = vmatprep.subr.bf16.mxu0 0
    %504 = vmatpush1.bf16.msra.mxu0 0
    %505 = vmatprep.subr.bf16.mxu0 0
    %506 = vmatpush1.bf16.msra.mxu0 0
    %507 = vmatprep.subr.bf16.mxu0 0
    %508 = vmatpush1.bf16.msra.mxu0 0
    %509 = vmatprep.subr.bf16.mxu0 0
    %510 = vmatpush1.bf16.msra.mxu0 0
    %511 = vmatprep.subr.bf16.mxu0 0
    %512 = vmatpush1.bf16.msra.mxu0 0
    %513 = vmatprep.subr.bf16.mxu0 0
    %514 = vmatpush1.bf16.msra.mxu0 0
    %515 = vmatprep.subr.bf16.mxu0 0
    %516 = vmatpush1.bf16.msra.mxu0 0
    %517 = vmatprep.mubr.bf16.mxu0 0
    %518 = vmatmul.mubr.bf16.gmra.mrb[0].mxu0 %v413
    %v519 = vpop.f32.mrb[0].mxu0
    %v520 = vadd.f32 %v435, %v519
    %v521 = vpop.f32.mrb[0].mxu0
    %v522 = vpop.f32.mrb[0].mxu0
    %v523 = vpop.f32.mrb[0].mxu0
    %524 = vdwg.mxu0
    %v525 = vmax.f32 %v520, 0.0
    %v526 = vpack.c.bf16 %v525, %v525
    %v527 = vld [vmem:[#allocation7] sm:$0xf]
    %v528 = vld [vmem:[#allocation7 + $0x4] sm:$0xf]
    %v529 = vld [vmem:[#allocation7 + $0x8] sm:$0xf]
    %v530 = vld [vmem:[#allocation7 + $0xc] sm:$0xf]
    %v531 = vld [vmem:[#allocation7 + $0x10] sm:$0xf]
    %v532 = vld [vmem:[#allocation7 + $0x14] sm:$0xf]
    %v533 = vld [vmem:[#allocation7 + $0x18] sm:$0xf]
    %v534 = vld [vmem:[#allocation7 + $0x1c] sm:$0xf]
    %v535 = vld [vmem:[#allocation7 + $0x20] sm:$0xf]
    %v536 = vld [vmem:[#allocation7 + $0x24] sm:$0xf]
    %v537 = vld [vmem:[#allocation7 + $0x28] sm:$0xf]
    %v538 = vld [vmem:[#allocation7 + $0x2c] sm:$0xf]
    %v539 = vld [vmem:[#allocation7 + $0x30] sm:$0xf]
    %v540 = vld [vmem:[#allocation7 + $0x34] sm:$0xf]
    %v541 = vld [vmem:[#allocation7 + $0x38] sm:$0xf]
    %v542 = vld [vmem:[#allocation7 + $0x3c] sm:$0xf]
    %v543 = vld [vmem:[%s6] sm:$0x1]
    %v545 = vlaneseq
    %v546 = vshrl.u32 %v545, 7
    %v547 = vsub.s32 0, %v546
    %v548 = vrot.slane %v543, %v547
    %v566 = vunpack.c.l.b16 %v527
    %v567 = vunpack.c.l.b16 %v528
    %v568 = vunpack.c.l.b16 %v529
    %v569 = vunpack.c.l.b16 %v530
    %v570 = vunpack.c.l.b16 %v531
    %v571 = vunpack.c.l.b16 %v532
    %v572 = vunpack.c.l.b16 %v533
    %v573 = vunpack.c.l.b16 %v534
    %v574 = vunpack.c.l.b16 %v535
    %v575 = vunpack.c.l.b16 %v536
    %v576 = vunpack.c.l.b16 %v537
    %v577 = vunpack.c.l.b16 %v538
    %v578 = vunpack.c.l.b16 %v539
    %v579 = vunpack.c.l.b16 %v540
    %v580 = vunpack.c.l.b16 %v541
    %v581 = vunpack.c.l.b16 %v542
    %v582 = vpack.c.b16 %v567, %v566
    %v583 = vpack.c.b16 %v569, %v568
    %v584 = vpack.c.b16 %v571, %v570
    %v585 = vpack.c.b16 %v573, %v572
    %v586 = vpack.c.b16 %v575, %v574
    %v587 = vpack.c.b16 %v577, %v576
    %v588 = vpack.c.b16 %v579, %v578
    %v589 = vpack.c.b16 %v581, %v580
    %598 = vmatprep.subr.bf16.mxu0 0
    %599 = vmatpush1.bf16.msra.mxu0 %v582
    %600 = vmatprep.subr.bf16.mxu0 0
    %601 = vmatpush1.bf16.msra.mxu0 %v583
    %602 = vmatprep.subr.bf16.mxu0 0
    %603 = vmatpush1.bf16.msra.mxu0 %v584
    %604 = vmatprep.subr.bf16.mxu0 0
    %605 = vmatpush1.bf16.msra.mxu0 %v585
    %606 = vmatprep.subr.bf16.mxu0 0
    %607 = vmatpush1.bf16.msra.mxu0 %v586
    %608 = vmatprep.subr.bf16.mxu0 0
    %609 = vmatpush1.bf16.msra.mxu0 %v587
    %610 = vmatprep.subr.bf16.mxu0 0
    %611 = vmatpush1.bf16.msra.mxu0 %v588
    %612 = vmatprep.subr.bf16.mxu0 0
    %613 = vmatpush1.bf16.msra.mxu0 %v589
    %614 = vmatprep.subr.bf16.mxu0 0
    %615 = vmatpush1.bf16.msra.mxu0 0
    %616 = vmatprep.subr.bf16.mxu0 0
    %617 = vmatpush1.bf16.msra.mxu0 0
    %618 = vmatprep.subr.bf16.mxu0 0
    %619 = vmatpush1.bf16.msra.mxu0 0
    %620 = vmatprep.subr.bf16.mxu0 0
    %621 = vmatpush1.bf16.msra.mxu0 0
    %622 = vmatprep.subr.bf16.mxu0 0
    %623 = vmatpush1.bf16.msra.mxu0 0
    %624 = vmatprep.subr.bf16.mxu0 0
    %625 = vmatpush1.bf16.msra.mxu0 0
    %626 = vmatprep.subr.bf16.mxu0 0
    %627 = vmatpush1.bf16.msra.mxu0 0
    %628 = vmatprep.subr.bf16.mxu0 0
    %629 = vmatpush1.bf16.msra.mxu0 0
    %630 = vmatprep.mubr.bf16.mxu0 0
    %631 = vmatmul.mubr.bf16.gmra.mrb[0].mxu0 %v526
    %v632 = vpop.f32.mrb[0].mxu0
    %v633 = vadd.f32 %v548, %v632
    %v634 = vpop.f32.mrb[0].mxu0
    %v635 = vpop.f32.mrb[0].mxu0
    %v636 = vpop.f32.mrb[0].mxu0
    %637 = vdwg.mxu0
    %638 = vst [vmem:[#allocation8] sm:$0xff] %v633
    // Predicated region
    $region42: #{forward.1} parent=1 // pred_check
      _
    $region43: #{forward.1} parent=1 // pred_check_branch
      %640 = sbr.rel (0) target = $region45
    $region44: #{forward.1} parent=1 // pred_region
      %s642 = ssub.s32 128, 32
      %643 = vsyncadd [#allocation4], %s642
      %s644 = sshll.u32 [#allocation8], 4
      %s645 = int_to_ptr.vmem [resolvable:$true] %s644
      %650 = dma.vmem_to_hbm [thread:$0]  %s645, 32, %s7, [#allocation4], 32, 32, 2
    $region45: #{forward.1} parent=1 // pred_fallthru
      _
    // Predicated region
    $region46: #{forward.1} parent=1 // pred_check
      _
    $region47: #{forward.1} parent=1 // pred_check_branch
      %652 = sbr.rel (0) target = $region49
    $region48: #{forward.1} parent=1 // pred_region
      %653 = dma.done [#allocation4], 128
    $region49: #{forward.1} parent=1 // pred_fallthru
      _
    %654 = vsyncpa [#allocation3], 1
    %655 = vsyncpa [#allocation6], 1
    %656 = vsyncpa [#allocation4], 1

</llo_original>
